<compile_context>
chip_gen: v7x
topology: tpu7x:2x2x1
jax: 0.10.0
libtpu: 0.0.40
codegen_flags: <defaults>
</compile_context>

<pallas_src>
import functools

import jax
import jax.numpy as jnp
from jax.experimental import pallas as pl
from jax.experimental.pallas import tpu as pltpu


def _fbl_kernel(feat_ref, out_ref, lam_ref, label_ref, loss_ref, acc_ref,
                *, f_total, f_tile, mask_tail):
    # feat_ref : [bB, fT]  native dtype (flattened feature-map tile, streamed)
    # out_ref  : [bB, C]   raw logits (resident across the F loop)
    # lam_ref  : [1,  C]   class-balance weights (resident)
    # label_ref: [bB, 1]   int32 labels (resident)
    # loss_ref : [bB, 1]   per-sample cross-entropy (written at last F step)
    # acc_ref  : [bB, 1]   f32 scratch: running sum of squares
    k = pl.program_id(1)
    last = pl.num_programs(1) - 1

    @pl.when(k == 0)
    def _():
        acc_ref[...] = jnp.zeros_like(acc_ref)

    def accumulate(masked):
        # Upcast the tile in-register (v5e VPU has no bf16) and add ||tile||^2.
        f = feat_ref[...].astype(jnp.float32)                       # [bB, fT]
        if masked:
            # The last F tile may extend past the true feature length; the
            # out-of-bounds lanes hold garbage, so zero them before squaring.
            col = jax.lax.broadcasted_iota(jnp.int32, f.shape, 1)
            f = jnp.where(col < (f_total - k * f_tile), f, 0.0)
        acc_ref[...] += jnp.sum(f * f, axis=-1, keepdims=True)      # [bB, 1]

    if not mask_tail:
        accumulate(masked=False)
    else:
        # Gate the iota/compare/select to the last tile only: every other tile
        # is a plain mul+add streaming accumulate.
        @pl.when(k < last)
        def _():
            accumulate(masked=False)

        @pl.when(k == last)
        def _():
            accumulate(masked=True)

    @pl.when(k == last)
    def _():
        out = out_ref[...].astype(jnp.float32)                      # [bB, C]
        lam = lam_ref[...].astype(jnp.float32)                      # [1,  C]
        labels = label_ref[...]                                     # [bB, 1]
        bB, C = out.shape

        norm = jnp.sqrt(acc_ref[...])                               # [bB, 1]
        # Exact division (runs once per B-tile -> cost negligible); matches
        # torch's lambda_ / (norm + 1e-12) rather than an approx reciprocal.
        logit = out - lam / (norm + 1e-12)                          # [bB, C]

        # Numerically stable cross entropy (per-sample; mean taken in wrapper).
        m = jnp.max(logit, axis=-1, keepdims=True)                  # [bB, 1]
        lse = m + jnp.log(jnp.sum(jnp.exp(logit - m), axis=-1, keepdims=True))
        col = jax.lax.broadcasted_iota(jnp.int32, (bB, C), 1)
        onehot = (col == labels).astype(jnp.float32)
        picked = jnp.sum(onehot * logit, axis=-1, keepdims=True)    # [bB, 1]
        loss_ref[...] = lse - picked


def make_lambda(num_per_class):
    """Deterministic replication of the torch __init__ lambda_ computation."""
    npc = jnp.asarray(num_per_class, dtype=jnp.float32)
    lam = jnp.nan_to_num(jnp.log(npc), nan=0.0, neginf=0.0)
    lam = jnp.max(lam) - lam
    lam = lam / jnp.sum(lam)
    return lam                                                      # [C]


def _vmem_capacity_bytes():
    # Generation-aware query: 128 MiB on v5e/v6e, 64 MiB per core on v7x.
    try:
        cap = int(pltpu.get_tpu_info().vmem_capacity_bytes)
        if cap > 0:
            return cap
    except Exception:
        pass
    return 64 << 20   # conservative fallback (safe on every generation)


def _pick_batch_tile(b_pad):
    # b_pad is a multiple of 8.  Cap the tile at b_pad//2 so the grid has at
    # least two batch iterations whenever possible -> the "parallel" axis can
    # be split across v7x's two TensorCores (harmless on v5e/v6e).
    cap = min(512, max(8, (b_pad // 2) // 8 * 8))
    for cand in range(cap, 7, -8):
        if b_pad % cand == 0:
            return cand
    return 8


def _pick_feature_tile(f_total, b_tile, itemsize, per_buf_bytes):
    # Byte-budgeted, lane-aligned feature tile: the kernel is an HBM-bound
    # streaming reduction, so DMA (block) size is the only real lever.
    f_tile = (per_buf_bytes // max(b_tile * itemsize, 1)) // 128 * 128
    if f_tile >= f_total:
        return f_total, 1, False          # single full block (always legal)
    f_tile = max(f_tile, 128)
    if f_total % f_tile != 0:
        # Prefer a nearby lane-aligned tile that divides F exactly so the
        # tail mask disappears entirely.
        for cand in range(f_tile, max(128, f_tile - 128 * 64) - 1, -128):
            if f_total % cand == 0:
                f_tile = cand
                break
    n_f = -(-f_total // f_tile)
    return f_tile, n_f, (f_total % f_tile != 0)


@functools.partial(jax.jit, static_argnames=("total_local_epochs",))
def feature_balance_loss(out, label, feature_map, curr, lambda_,
                         total_local_epochs):
    B, C = out.shape
    # Keep the native dtype: the upcast happens per-tile inside the kernel.
    feat = feature_map.reshape(B, -1)                               # [B, F]
    F = feat.shape[1]
    lam = lambda_.reshape(1, C)                                     # [1, C]
    lab = label.reshape(B, 1).astype(jnp.int32)                     # [B, 1]

    # alpha = (curr / total_local_epochs) ** 2 is unused by the torch forward's
    # return value; kept here only as documentation.
    del curr

    # Pad the batch to a sublane multiple so every block is (8,128)-aligned and
    # bounded; padded rows are sliced out of the final mean below.
    B_pad = -(-B // 8) * 8
    if B_pad != B:
        pad = B_pad - B
        feat = jnp.pad(feat, ((0, pad), (0, 0)))
        out = jnp.pad(out, ((0, pad), (0, 0)))
        lab = jnp.pad(lab, ((0, pad), (0, 0)))

    bB = _pick_batch_tile(B_pad)
    nb = B_pad // bB

    # Generation-aware VMEM budget -> per-stream-buffer byte target -> tile.
    vmem_budget = (_vmem_capacity_bytes() * 3) // 4                 # ~75% cap
    aux_bytes = (2 * (bB * C * out.dtype.itemsize + C * 4 + bB * 4 + bB * 4)
                 + bB * 4 + (1 << 20))
    per_buf = (vmem_budget - aux_bytes) // 3          # 2 stream bufs + slack
    per_buf = int(min(max(per_buf, 4 << 20), 24 << 20))
    fT, nf, mask_tail = _pick_feature_tile(F, bB, feat.dtype.itemsize, per_buf)

    feat_block_bytes = bB * fT * feat.dtype.itemsize
    vmem_limit = int(min(max(2 * feat_block_bytes + aux_bytes + (4 << 20),
                             16 << 20),
                         vmem_budget))

    cost = pl.CostEstimate(
        flops=2 * B * F + 8 * B * C,
        transcendentals=B * C + 2 * B,
        bytes_accessed=B * F * feat.dtype.itemsize
        + B * C * out.dtype.itemsize + C * 4 + B * 4 + B * 4,
    )

    kernel = functools.partial(_fbl_kernel, f_total=F, f_tile=fT,
                               mask_tail=mask_tail)

    per_sample = pl.pallas_call(
        kernel,
        out_shape=jax.ShapeDtypeStruct((B_pad, 1), jnp.float32),
        grid=(nb, nf),
        in_specs=[
            pl.BlockSpec((bB, fT), lambda i, k: (i, k)),      # feat : streamed
            pl.BlockSpec((bB, C), lambda i, k: (i, 0)),       # out  : resident
            pl.BlockSpec((1, C), lambda i, k: (0, 0)),        # lam  : resident
            pl.BlockSpec((bB, 1), lambda i, k: (i, 0)),       # label: resident
        ],
        out_specs=pl.BlockSpec((bB, 1), lambda i, k: (i, 0)),
        scratch_shapes=[pltpu.VMEM((bB, 1), jnp.float32)],
        compiler_params=pltpu.CompilerParams(
            dimension_semantics=("parallel", "arbitrary"),
            vmem_limit_bytes=vmem_limit),
        cost_estimate=cost,
    )(feat, out, lam, lab)

    # Mean over the true (unpadded) batch.
    return jnp.sum(per_sample[:B, 0]) / B


if __name__ == "__main__":
    # Small deterministic example: B=2 samples, C=4 classes,
    # feature_map [2, 4, 16, 16] (NCHW) -> F = 1024.
    key = jax.random.PRNGKey(0)
    k1, k2, k3 = jax.random.split(key, 3)

    B, C = 2, 4
    total_local_epochs = 10
    curr = 3
    num_per_class = [10.0, 20.0, 30.0, 40.0]

    out = jax.random.normal(k1, (B, C), dtype=jnp.float32)
    feature_map = jax.random.normal(k2, (B, 4, 16, 16), dtype=jnp.float32)
    label = jax.random.randint(k3, (B,), 0, C, dtype=jnp.int32)

    lambda_ = make_lambda(num_per_class)

    loss = feature_balance_loss(out, label, feature_map, curr, lambda_,
                                total_local_epochs=total_local_epochs)
    jax.block_until_ready(loss)
    print("KERNEL_OK")
</pallas_src>

<mosaic_0001>
module attributes {stable_mosaic.version = 11 : i64} {
  func.func @_fbl_kernel(%arg0: i32, %arg1: i32, %arg2: memref<8x1024xf32, #tpu.memory_space<vmem>>, %arg3: memref<8x4xf32, #tpu.memory_space<vmem>>, %arg4: memref<1x4xf32, #tpu.memory_space<vmem>>, %arg5: memref<8x1xi32, #tpu.memory_space<vmem>>, %arg6: memref<8x1xf32, #tpu.memory_space<vmem>>, %arg7: memref<8x1xf32, #tpu.memory_space<vmem>>) attributes {dimension_semantics = [#tpu.dimension_semantics<parallel>, #tpu.dimension_semantics<arbitrary>], iteration_bounds = array<i64: 1, 1>, scalar_prefetch = 0 : i64, scratch_operands = 1 : i64, tpu.core_type = #tpu.core_type<tc>, window_params = [{transform_indices = @transform_0, window_bounds = array<i64: 8, 1024>}, {transform_indices = @transform_1, window_bounds = array<i64: 8, 4>}, {pipeline_mode = #tpu.pipeline_mode<synchronous>, transform_indices = @transform_2, window_bounds = array<i64: 1, 4>}, {transform_indices = @transform_3, window_bounds = array<i64: 8, 1>}, {transform_indices = @transform_4, window_bounds = array<i64: 8, 1>}]} {
    %c0_i32 = arith.constant 0 : i32
    %0 = arith.cmpi eq, %arg1, %c0_i32 : i32
    %1 = arith.extui %0 : i1 to i32
    %c0_i32_0 = arith.constant 0 : i32
    %2 = arith.cmpi ne, %1, %c0_i32_0 : i32
    scf.if %2 {
      %cst_8 = arith.constant 0.000000e+00 : f32
      %13 = vector.broadcast %cst_8 : f32 to vector<8x1xf32>
      %c0_9 = arith.constant 0 : index
      %c0_10 = arith.constant 0 : index
      %14 = vector.load %arg7[%c0_9, %c0_10] : memref<8x1xf32, #tpu.memory_space<vmem>>, vector<8x1xf32>
      tpu.vector_store %arg7[%c0_9, %c0_10], %13 {strides = array<i32>} : memref<8x1xf32, #tpu.memory_space<vmem>>, vector<8x1xf32>,
    } else {
    }
    %c0 = arith.constant 0 : index
    %c0_1 = arith.constant 0 : index
    %3 = vector.load %arg2[%c0, %c0_1] : memref<8x1024xf32, #tpu.memory_space<vmem>>, vector<8x1024xf32>
    %c0_2 = arith.constant 0 : index
    %c0_3 = arith.constant 0 : index
    %4 = vector.load %arg7[%c0_2, %c0_3] : memref<8x1xf32, #tpu.memory_space<vmem>>, vector<8x1xf32>
    %5 = arith.mulf %3, %3 : vector<8x1024xf32>
    %cst = arith.constant dense<0.000000e+00> : vector<8xf32>
    %6 = vector.multi_reduction <add>, %5, %cst [1] : vector<8x1024xf32> to vector<8xf32>
    %7 = vector.shape_cast %6 : vector<8xf32> to vector<8x1xf32>
    %8 = arith.addf %4, %7 : vector<8x1xf32>
    %c0_4 = arith.constant 0 : index
    %c0_5 = arith.constant 0 : index
    %9 = vector.load %arg7[%c0_4, %c0_5] : memref<8x1xf32, #tpu.memory_space<vmem>>, vector<8x1xf32>
    tpu.vector_store %arg7[%c0_4, %c0_5], %8 {strides = array<i32>} : memref<8x1xf32, #tpu.memory_space<vmem>>, vector<8x1xf32>,
    %c0_i32_6 = arith.constant 0 : i32
    %10 = arith.cmpi eq, %arg1, %c0_i32_6 : i32
    %11 = arith.extui %10 : i1 to i32
    %c0_i32_7 = arith.constant 0 : i32
    %12 = arith.cmpi ne, %11, %c0_i32_7 : i32
    scf.if %12 {
      %c0_8 = arith.constant 0 : index
      %c0_9 = arith.constant 0 : index
      %13 = vector.load %arg3[%c0_8, %c0_9] : memref<8x4xf32, #tpu.memory_space<vmem>>, vector<8x4xf32>
      %c0_10 = arith.constant 0 : index
      %c0_11 = arith.constant 0 : index
      %14 = vector.load %arg4[%c0_10, %c0_11] : memref<1x4xf32, #tpu.memory_space<vmem>>, vector<1x4xf32>
      %c0_12 = arith.constant 0 : index
      %c0_13 = arith.constant 0 : index
      %15 = vector.load %arg5[%c0_12, %c0_13] : memref<8x1xi32, #tpu.memory_space<vmem>>, vector<8x1xi32>
      %c0_14 = arith.constant 0 : index
      %c0_15 = arith.constant 0 : index
      %16 = vector.load %arg7[%c0_14, %c0_15] : memref<8x1xf32, #tpu.memory_space<vmem>>, vector<8x1xf32>
      %17 = math.sqrt %16 : vector<8x1xf32>
      %cst_16 = arith.constant 9.99999996E-13 : f32
      %18 = vector.broadcast %cst_16 : f32 to vector<8x1xf32>
      %19 = arith.addf %17, %18 : vector<8x1xf32>
      %20 = vector.broadcast %14 : vector<1x4xf32> to vector<8x4xf32>
      %21 = vector.broadcast %19 : vector<8x1xf32> to vector<8x4xf32>
      %22 = arith.divf %20, %21 : vector<8x4xf32>
      %23 = arith.subf %13, %22 : vector<8x4xf32>
      %cst_17 = arith.constant dense<0xFF800000> : vector<8xf32>
      %24 = vector.multi_reduction <maximumf>, %23, %cst_17 [1] : vector<8x4xf32> to vector<8xf32>
      %25 = vector.shape_cast %24 : vector<8xf32> to vector<8x1xf32>
      %26 = vector.broadcast %25 : vector<8x1xf32> to vector<8x4xf32>
      %27 = arith.subf %23, %26 : vector<8x4xf32>
      %28 = math.exp %27 : vector<8x4xf32>
      %cst_18 = arith.constant dense<0.000000e+00> : vector<8xf32>
      %29 = vector.multi_reduction <add>, %28, %cst_18 [1] : vector<8x4xf32> to vector<8xf32>
      %30 = vector.shape_cast %29 : vector<8xf32> to vector<8x1xf32>
      %31 = math.log %30 : vector<8x1xf32>
      %32 = arith.addf %25, %31 : vector<8x1xf32>
      %33 = tpu.iota {dimensions = array<i32: 1>} : vector<8x4xi32>
      %34 = vector.broadcast %15 : vector<8x1xi32> to vector<8x4xi32>
      %35 = arith.cmpi eq, %33, %34 : vector<8x4xi32>
      %36 = arith.extui %35 : vector<8x4xi1> to vector<8x4xi32>
      %37 = arith.sitofp %36 : vector<8x4xi32> to vector<8x4xf32>
      %38 = arith.mulf %37, %23 : vector<8x4xf32>
      %cst_19 = arith.constant dense<0.000000e+00> : vector<8xf32>
      %39 = vector.multi_reduction <add>, %38, %cst_19 [1] : vector<8x4xf32> to vector<8xf32>
      %40 = vector.shape_cast %39 : vector<8xf32> to vector<8x1xf32>
      %41 = arith.subf %32, %40 : vector<8x1xf32>
      %c0_20 = arith.constant 0 : index
      %c0_21 = arith.constant 0 : index
      %42 = vector.load %arg6[%c0_20, %c0_21] : memref<8x1xf32, #tpu.memory_space<vmem>>, vector<8x1xf32>
      tpu.vector_store %arg6[%c0_20, %c0_21], %41 {strides = array<i32>} : memref<8x1xf32, #tpu.memory_space<vmem>>, vector<8x1xf32>,
    } else {
    }
    return
  }
  func.func @transform_0(%arg0: i32, %arg1: i32) -> (i32, i32) {
    %c0_i32 = arith.constant 0 : i32
    return %arg0, %arg1 : i32, i32
  }
  func.func @transform_1(%arg0: i32, %arg1: i32) -> (i32, i32) {
    %c0_i32 = arith.constant 0 : i32
    %c0_i32_0 = arith.constant 0 : i32
    return %arg0, %c0_i32 : i32, i32
  }
  func.func @transform_2(%arg0: i32, %arg1: i32) -> (i32, i32) {
    %c0_i32 = arith.constant 0 : i32
    %c0_i32_0 = arith.constant 0 : i32
    %c0_i32_1 = arith.constant 0 : i32
    return %c0_i32, %c0_i32_0 : i32, i32
  }
  func.func @transform_3(%arg0: i32, %arg1: i32) -> (i32, i32) {
    %c0_i32 = arith.constant 0 : i32
    %c0_i32_0 = arith.constant 0 : i32
    return %arg0, %c0_i32 : i32, i32
  }
  func.func @transform_4(%arg0: i32, %arg1: i32) -> (i32, i32) {
    %c0_i32 = arith.constant 0 : i32
    %c0_i32_0 = arith.constant 0 : i32
    return %arg0, %c0_i32 : i32, i32
  }
}

</mosaic_0001>

<llo_original>
// kernel: feature_balance_loss.1
$region0: #{feature_balance_loss.1}
  #allocation0 [shape = 'u32[]', space=smem, size = 0x4, offset = 0x4, fixed_abs, tag = 'smem constant byte address 0x4 - core index']
  #allocation1 [shape = 'u32[144,128]{1,0:T(1,128)}', space=vmem, size = 0x12000, scoped, tag = 'internal scratch']
  #allocation2 [shape = 'f32[8,1]{1,0:T(8,128)}', space=vmem, size = 0x1000, scoped, tag = 'scratch operand']
  %s0 = inlined_call_operand.vmem [shape: f32[8,1024], index: 0, kind: input, shape index: {}]
  %s1 = inlined_call_operand.vmem [shape: f32[8,4], index: 1, kind: input, shape index: {}]
  %s2 = inlined_call_operand.vmem [shape: f32[1,4], index: 2, kind: input, shape index: {}]
  %s3 = inlined_call_operand.vmem [shape: s32[8,1], index: 3, kind: input, shape index: {}]
  %s4 = inlined_call_operand.vmem [shape: f32[8,1], index: 4, kind: output, shape index: {}]
  %s5 = sld [smem:[#allocation0]]
  $region34: #{feature_balance_loss.1} parent=0
    _
  %s7 = ssub.s32 1, %s5
  %s8 = scalar_select 0, %s7, %s5
  // Predicated region
  $region2: #{feature_balance_loss.1} parent=0 // pred_check
    _
  $region3: #{feature_balance_loss.1} parent=0 // pred_check_branch
    %10 = sbr.rel (0) target = $region5
  $region4: #{feature_balance_loss.1} parent=0 // pred_region
    _
  $region5: #{feature_balance_loss.1} parent=0 // pred_fallthru
    _
  // Predicated region
  $region6: #{feature_balance_loss.1} parent=0 // pred_check
    _
  $region7: #{feature_balance_loss.1} parent=0 // pred_check_branch
    %12 = sbr.rel (0) target = $region9
  $region8: #{feature_balance_loss.1} parent=0 // pred_region
    _
  $region9: #{feature_balance_loss.1} parent=0 // pred_fallthru
    _
  // Predicated region
  $region10: #{feature_balance_loss.1} parent=0 // pred_check
    _
  $region11: #{feature_balance_loss.1} parent=0 // pred_check_branch
    %14 = sbr.rel (0) target = $region13
  $region12: #{feature_balance_loss.1} parent=0 // pred_region
    _
  $region13: #{feature_balance_loss.1} parent=0 // pred_fallthru
    _
  // Predicated region
  $region14: #{feature_balance_loss.1} parent=0 // pred_check
    _
  $region15: #{feature_balance_loss.1} parent=0 // pred_check_branch
    %16 = sbr.rel (0) target = $region17
  $region16: #{feature_balance_loss.1} parent=0 // pred_region
    _
  $region17: #{feature_balance_loss.1} parent=0 // pred_fallthru
    _
  %p17 = scmp.eq.s32.totalorder 0, 0
  // Predicated region
  $region18: #{feature_balance_loss.1} parent=0 // pred_check
    %p18 = pneg %p17
  $region19: #{feature_balance_loss.1} parent=0 // pred_check_branch
    %20 = sbr.rel (%p18) target = $region21
  $region20: #{feature_balance_loss.1} parent=0 // pred_region
    %vm21 = vcmask 7168
    %22 = vst.msk [vmem:[#allocation2] sm:$0xff] %vm21, 0.0
  $region21: #{feature_balance_loss.1} parent=0 // pred_fallthru
    _
  %v23 = vld [vmem:[%s0] sm:$0xff]
  %v24 = vld [vmem:[%s0 + $0x8] sm:$0xff]
  %v25 = vld [vmem:[%s0 + $0x10] sm:$0xff]
  %v26 = vld [vmem:[%s0 + $0x18] sm:$0xff]
  %v27 = vld [vmem:[%s0 + $0x20] sm:$0xff]
  %v28 = vld [vmem:[%s0 + $0x28] sm:$0xff]
  %v29 = vld [vmem:[%s0 + $0x30] sm:$0xff]
  %v30 = vld [vmem:[%s0 + $0x38] sm:$0xff]
  %v31 = vld [vmem:[#allocation2] sm:$0xff]
  %v32 = vmul.f32 %v23, %v23
  %v33 = vmul.f32 %v24, %v24
  %v34 = vmul.f32 %v25, %v25
  %v35 = vmul.f32 %v26, %v26
  %v36 = vmul.f32 %v27, %v27
  %v37 = vmul.f32 %v28, %v28
  %v38 = vmul.f32 %v29, %v29
  %v39 = vmul.f32 %v30, %v30
  %v40 = vadd.f32 %v32, %v33
  %v41 = vadd.f32 %v40, %v34
  %v42 = vadd.f32 %v41, %v35
  %v43 = vadd.f32 %v42, %v36
  %v44 = vadd.f32 %v43, %v37
  %v45 = vadd.f32 %v44, %v38
  %v46 = vadd.f32 %v45, %v39
  %47 = vadd.xlane.f32.xlu0 %v46
  %v48 = vpop.xlane.xlu0 %47
  %v49 = vadd.f32 %v31, %v48
  %vm50 = vcmask 7168
  %51 = vst.msk [vmem:[#allocation2] sm:$0xff] %vm50, %v49
  // Predicated region
  $region22: #{feature_balance_loss.1} parent=0 // pred_check
    %p52 = pneg %p17
  $region23: #{feature_balance_loss.1} parent=0 // pred_check_branch
    %54 = sbr.rel (%p52) target = $region25
  $region24: #{feature_balance_loss.1} parent=0 // pred_region
    %v55 = vld [vmem:[%s1] sm:$0xff]
    %v56 = vld [vmem:[%s2] sm:$0x1]
    %v57 = vld [vmem:[%s3] sm:$0xff]
    %v58 = vld [vmem:[#allocation2] sm:$0xff]
    %v59 = vrsqrt.pop %v58
    %v60 = vmul.f32 %v58, %v59
    %vm61 = vcmp.eq.f32.partialorder %v58, inf
    %v62 = vsel %vm61, %v58, %v60
    %vm63 = vcmp.eq.f32.partialorder %v58, 0.0
    %v64 = vand.u32 %v58, 2147483648
    %v65 = vsel %vm63, %v64, %v62
    %v66 = vadd.f32 %v65, 1e-12
    %v68 = vlaneseq
    %v69 = vshrl.u32 %v68, 7
    %v70 = vsub.s32 0, %v69
    %v71 = vrot.slane %v56, %v70
    %74 = vset.pattern.permute.xlu0 0
    %75 = vperm.xlu0 %74, %v66
    %v76 = vpop.permute.xlu0 %75
    %v78 = vrcp.pop %v76
    %v79 = vmul.f32 %v71, %v78
    %v80 = vsub.f32 %v55, %v79
    %vm81 = vcmask 31744
    %v82 = vsel %vm81, %v80, -inf
    %83 = vmax.xlane.f32.xlu0 %v82
    %v84 = vpop.xlane.xlu0 %83
    %v85 = vsub.f32 %v80, %v84
    %v86 = vmul.f32 %v85, 1.442695
    %v87 = vpow.pop %v86
    %v88 = vsel %vm81, %v87, 0.0
    %89 = vadd.xlane.f32.xlu0 %v88
    %v90 = vpop.xlane.xlu0 %89
    %v91 = vlog2.pop %v90
    %v92 = vmul.f32 %v91, 0.6931472
    %v93 = vadd.f32 %v84, %v92
    %v94 = vlaneseq
    %v95 = vand.u32 %v94, 127
    %96 = vset.pattern.permute.xlu0 0
    %97 = vperm.xlu0 %96, %v57
    %v98 = vpop.permute.xlu0 %97
    %vm99 = vcmp.eq.s32.totalorder %v95, %v98
    %v100 = vsel %vm99, 1, 0
    %v101 = vcvt.s32.f32 %v100
    %v102 = vmul.f32 %v101, %v80
    %v103 = vsel %vm81, %v102, 0.0
    %104 = vadd.xlane.f32.xlu0 %v103
    %v105 = vpop.xlane.xlu0 %104
    %v106 = vsub.f32 %v93, %v105
    %107 = vst.msk [vmem:[%s4] sm:$0xff] %vm50, %v106
  $region25: #{feature_balance_loss.1} parent=0 // pred_fallthru
    _
  // Predicated region
  $region26: #{feature_balance_loss.1} parent=0 // pred_check
    _
  $region27: #{feature_balance_loss.1} parent=0 // pred_check_branch
    %109 = sbr.rel (0) target = $region29
  $region28: #{feature_balance_loss.1} parent=0 // pred_region
    _
  $region29: #{feature_balance_loss.1} parent=0 // pred_fallthru
    _
  // Predicated region
  $region30: #{feature_balance_loss.1} parent=0 // pred_check
    _
  $region31: #{feature_balance_loss.1} parent=0 // pred_check_branch
    %111 = sbr.rel (0) target = $region33
  $region32: #{feature_balance_loss.1} parent=0 // pred_region
    _
  $region33: #{feature_balance_loss.1} parent=0 // pred_fallthru
    _

</llo_original>
